<compile_context>
chip_gen: v6e
topology: v6e:2x2x1
jax: 0.10.0
libtpu: 0.0.40
codegen_flags: <defaults>
</compile_context>

<pallas_src>
import jax
import jax.numpy as jnp
from jax.experimental import pallas as pl
from jax.experimental.pallas import tpu as pltpu

_F32 = jnp.float32


def _make_kernel(*, layers, block_b, n_nodes, mem_dim, head_dim, compute_dtype):
    """Builds the kernel body for a static number of GCN sub-layers."""
    bt, N, D, H = block_b, n_nodes, mem_dim, head_dim
    f32 = _F32
    use_vpu_adj = N <= 16   # tiny N: batched MXU matmuls would be ~(N/256)^2 utilized

    def kernel(adj_ref, x_ref, *rest):
        p = rest[:-1]                       # W_0, b_0, ..., W_out, b_out
        out_ref = rest[-1]                  # (bt, N, D) f32

        adj = adj_ref[...]                  # (bt, N, N) compute_dtype (0/1 -> exact)
        x3 = x_ref[...]                     # (bt, N, D) f32
        x2 = x3.reshape(bt * N, D)          # batch folded into the matmul M dim

        # denom = adj.sum(-1) + 1.  0/1 degrees are exact in bf16 up to 256, so no
        # full-tile f32 cast of adj is needed; reciprocal hoisted once (EUP).
        if N <= 256:
            deg = jnp.sum(adj, axis=-1, keepdims=True).astype(f32)      # (bt, N, 1)
        else:
            deg = jnp.sum(adj.astype(f32), axis=-1, keepdims=True)
        inv_denom = pl.reciprocal(deg + 1.0, approx=True)               # (bt, N, 1)
        # Hoisted broadcast (JAX does not CSE broadcast_in_dim inside the loop).
        inv_b = jnp.broadcast_to(inv_denom.reshape(bt * N, 1), (bt * N, H))

        # Adjacency product helper with f32 accumulation; bf16-rounded operands
        # so numerics match the MXU path / reference regardless of branch.
        if use_vpu_adj:
            adj_e = adj.astype(f32)[:, :, :, None]                      # hoisted once

            def adj_product(y):             # y: (bt, N, d) -> (bt, N, d) f32
                yb = y.astype(compute_dtype).astype(f32)[:, None, :, :]
                return jnp.sum(adj_e * yb, axis=2)                      # sublane reduce
        else:
            def adj_product(y):
                return jnp.einsum("bij,bjd->bid", adj, y.astype(compute_dtype),
                                  preferred_element_type=f32)

        # adj @ x, computed once and reused by every layer's partial matmul.
        ax0_c = adj_product(x3).astype(compute_dtype).reshape(bt * N, D)

        ax_blocks = []      # bf16 (bt*N, H): adj @ g_k, k = 0..layers-2
        g_f32 = []          # f32  (bt*N, H): per-layer activations (residual/output)
        for l in range(layers):
            w = p[2 * l][...]               # (D + l*H, H) compute_dtype
            b = p[2 * l + 1][...]           # (1, H) f32

            # Linear over the growing prefix, decomposed into per-block partial
            # matmuls (static, sublane-aligned row slices of W).  Replaces the
            # O(L^2) slice/reshape/recast of a growing f32 slab.
            acc = jnp.dot(ax0_c, w[0:D, :], preferred_element_type=f32)
            for k in range(l):
                acc = acc + jnp.dot(ax_blocks[k],
                                    w[D + k * H:D + (k + 1) * H, :],
                                    preferred_element_type=f32)
            axw = acc + b                                               # (bt*N, H)
            g = jnp.maximum(axw * inv_b, 0.0)                           # (bt*N, H)
            # TODO(synk): self.gcn_drop (dropout) is identity here (eval mode).
            g_f32.append(g)
            if l + 1 < layers:
                axg = adj_product(g.astype(compute_dtype).reshape(bt, N, H))
                ax_blocks.append(axg.astype(compute_dtype).reshape(bt * N, H))

        # Residual + output Linear: single (non-growing) concat of the per-layer
        # activations, residual add in f32, one (bt*N, D) x (D, D) matmul.
        gcn = jnp.concatenate(g_f32, axis=-1) + x2                      # (bt*N, D)
        w_out = p[2 * layers][...]          # (D, D) compute_dtype
        b_out = p[2 * layers + 1][...]      # (1, D) f32
        out = jnp.dot(gcn.astype(compute_dtype), w_out,
                      preferred_element_type=f32) + b_out               # (bt*N, D)
        out_ref[...] = out.reshape(bt, N, D)

    return kernel


def _tpu_vmem_budget_bytes():
    """Generation-aware VMEM budget: capacity minus pipeline headroom."""
    cap = 64 * 1024 * 1024                   # conservative fallback (v7x per-TC size)
    try:
        cap = int(pltpu.get_tpu_info().vmem_capacity_bytes)
    except Exception:
        pass
    # Leave headroom for Mosaic's own scratch and the double-buffered DMA pipeline.
    return max(32 * 1024 * 1024, min(cap - 16 * 1024 * 1024, 112 * 1024 * 1024))


def _choose_block_b(B, N, D, H, layers, bpe_c, budget_bytes):
    """Largest batch tile that fits the VMEM budget, keeping >=2 grid tiles."""
    per_b = 2 * N * N * bpe_c                     # adj tile, double-buffered
    per_b += 2 * N * D * 4                        # x tile (f32), double-buffered
    per_b += 2 * N * D * 4                        # out tile (f32), double-buffered
    per_b += N * (4 * D + 4 * layers * H) * 4     # traced f32 working set (heuristic)
    if N <= 16:
        per_b += N * N * max(D, H) * 4            # VPU adj-product broadcast temp
    bb = max(1, budget_bytes // max(per_b, 1))
    bb = min(bb, B)
    if B > 1:
        bb = min(bb, (B + 1) // 2)                # >=2 tiles for v7x's 2 TensorCores
    return int(bb)


def graph_conv_layer_pallas(adj, x, params, *, layers, block_b=None,
                            compute_dtype=jnp.bfloat16):
    """adj: (B, N, N), x: (B, N, mem_dim). Returns (B, N, mem_dim) f32."""
    B, N, _ = adj.shape
    mem_dim = x.shape[-1]
    assert mem_dim % layers == 0, (
        "layers must divide mem_dim (residual needs head_dim * layers == mem_dim)")
    head_dim = mem_dim // layers
    f32 = _F32
    bpe_c = jnp.dtype(compute_dtype).itemsize

    vmem_budget = _tpu_vmem_budget_bytes()

    # Flatten parameters (weights in compute dtype, biases (1, out) f32).
    flat_params, param_specs = [], []
    for (W, b) in params["weight_list"]:
        Wc = W.astype(compute_dtype)
        b2 = b.reshape(1, -1).astype(f32)
        flat_params += [Wc, b2]
        param_specs += [pl.BlockSpec(Wc.shape, lambda i: (0, 0)),
                        pl.BlockSpec(b2.shape, lambda i: (0, 0))]
    W_o, b_o = params["linear_output"]
    W_oc = W_o.astype(compute_dtype)
    b_o2 = b_o.reshape(1, -1).astype(f32)
    flat_params += [W_oc, b_o2]
    param_specs += [pl.BlockSpec(W_oc.shape, lambda i: (0, 0)),
                    pl.BlockSpec(b_o2.shape, lambda i: (0, 0))]
    param_bytes = sum(int(p_.size) * p_.dtype.itemsize for p_ in flat_params)

    if block_b is None:
        block_b = _choose_block_b(B, N, mem_dim, head_dim, layers, bpe_c,
                                  vmem_budget - 2 * param_bytes)
    bt = max(1, min(int(block_b), B))

    # Pad the batch so awkward B never degrades to tiny tiles; slice output back.
    tiles = -(-B // bt)
    B_pad = tiles * bt
    adj_c = adj.astype(compute_dtype)   # 0/1 adjacency -> exact in bf16; halves HBM bytes
    x_f32 = x.astype(f32)
    if B_pad != B:
        pad = B_pad - B
        adj_c = jnp.pad(adj_c, ((0, pad), (0, 0), (0, 0)))
        x_f32 = jnp.pad(x_f32, ((0, pad), (0, 0), (0, 0)))

    in_specs = [
        pl.BlockSpec((bt, N, N), lambda i: (i, 0, 0)),
        pl.BlockSpec((bt, N, mem_dim), lambda i: (i, 0, 0)),
    ] + param_specs
    out_spec = pl.BlockSpec((bt, N, mem_dim), lambda i: (i, 0, 0))

    kernel = _make_kernel(layers=layers, block_b=bt, n_nodes=N,
                          mem_dim=mem_dim, head_dim=head_dim,
                          compute_dtype=compute_dtype)

    # Advisory cost estimate for XLA scheduling around the custom call.
    flops = 2 * B_pad * N * N * (mem_dim + (layers - 1) * head_dim)
    flops += sum(2 * B_pad * N * (mem_dim + l * head_dim) * head_dim
                 for l in range(layers))
    flops += 2 * B_pad * N * mem_dim * mem_dim
    bytes_accessed = (B_pad * N * N * bpe_c + 2 * B_pad * N * mem_dim * 4
                      + param_bytes)
    cost = pl.CostEstimate(flops=int(flops), transcendentals=int(B_pad * N),
                           bytes_accessed=int(bytes_accessed))

    out = pl.pallas_call(
        kernel,
        out_shape=jax.ShapeDtypeStruct((B_pad, N, mem_dim), f32),
        grid_spec=pltpu.PrefetchScalarGridSpec(
            num_scalar_prefetch=0,
            grid=(tiles,),
            in_specs=in_specs,
            out_specs=out_spec,
        ),
        compiler_params=pltpu.CompilerParams(
            dimension_semantics=("parallel",),   # batch tiles shard across v7x's 2 TCs
            vmem_limit_bytes=int(vmem_budget),
        ),
        cost_estimate=cost,
    )(adj_c, x_f32, *flat_params)
    return out[:B] if B_pad != B else out


def graph_conv_layer_ref(adj, x, params, *, layers, compute_dtype=jnp.bfloat16):
    """Pure-JAX reference mirroring the PyTorch forward (eval-mode dropout).

    Matmul operands are cast to `compute_dtype` with f32 accumulation so the
    reference mirrors the kernel's bf16 MXU numerics.
    """
    f32 = _F32
    adj_c = adj.astype(compute_dtype)
    denom = jnp.sum(adj.astype(f32), axis=2, keepdims=True) + 1.0
    outputs = x.astype(f32)
    cache_list = [outputs]
    output_list = []
    for l in range(layers):
        W, b = params["weight_list"][l]
        Ax = jnp.einsum("bij,bjd->bid", adj_c, outputs.astype(compute_dtype),
                        preferred_element_type=f32)
        AxW = jnp.einsum("bnd,dh->bnh", Ax.astype(compute_dtype),
                         W.astype(compute_dtype),
                         preferred_element_type=f32) + b.reshape(1, 1, -1)
        AxW = AxW / denom
        g = jax.nn.relu(AxW)
        cache_list.append(g)
        outputs = jnp.concatenate(cache_list, axis=2)
        output_list.append(g)
    gcn = jnp.concatenate(output_list, axis=2) + x.astype(f32)
    W_o, b_o = params["linear_output"]
    return jnp.einsum("bnd,do->bno", gcn.astype(compute_dtype),
                      W_o.astype(compute_dtype),
                      preferred_element_type=f32) + b_o.reshape(1, 1, -1)


def init_params(key, mem_dim: int, layers: int):
    head_dim = mem_dim // layers
    params = {"weight_list": [], "linear_output": None}
    for l in range(layers):
        in_dim = mem_dim + head_dim * l
        key, k1, k2 = jax.random.split(key, 3)
        bound = 1.0 / jnp.sqrt(in_dim)
        W = jax.random.uniform(k1, (in_dim, head_dim), jnp.float32, -bound, bound)
        b = jax.random.uniform(k2, (head_dim,), jnp.float32, -bound, bound)
        params["weight_list"].append((W, b))
    key, k1, k2 = jax.random.split(key, 3)
    bound = 1.0 / jnp.sqrt(mem_dim)
    W_o = jax.random.uniform(k1, (mem_dim, mem_dim), jnp.float32, -bound, bound)
    b_o = jax.random.uniform(k2, (mem_dim,), jnp.float32, -bound, bound)
    params["linear_output"] = (W_o, b_o)
    return params


if __name__ == "__main__":
    # Small shapes: batch=4, seq(N)=8, mem_dim=32, layers=2 -> head_dim=16.
    # Auto block_b picks 2 -> a 2-tile grid (exercises the pipeline + megacore path).
    B, N, MEM_DIM, LAYERS = 4, 8, 32, 2

    key = jax.random.PRNGKey(0)
    key, k_adj, k_x, k_p = jax.random.split(key, 4)

    # adjacency: non-negative 0/1 mask (dependency-graph adjacency)
    adj = (jax.random.uniform(k_adj, (B, N, N)) > 0.6).astype(jnp.float32)
    x = jax.random.normal(k_x, (B, N, MEM_DIM), dtype=jnp.float32)
    params = init_params(k_p, MEM_DIM, LAYERS)

    out = graph_conv_layer_pallas(adj, x, params, layers=LAYERS)
    out = jax.block_until_ready(out)

    ref = graph_conv_layer_ref(adj, x, params, layers=LAYERS)
    ref = jax.block_until_ready(ref)

    assert out.shape == (B, N, MEM_DIM)
    if not jnp.allclose(out, ref, atol=2e-2, rtol=2e-2):
        err = float(jnp.max(jnp.abs(out - ref)))
        raise AssertionError(
            f"Pallas kernel does not match reference (max abs err {err:.3e})")

    print("KERNEL_OK")
</pallas_src>

<mosaic_0001>
module attributes {stable_mosaic.version = 11 : i64} {
  func.func @kernel(%arg0: i32, %arg1: memref<2x8x8xbf16, #tpu.memory_space<vmem>>, %arg2: memref<2x8x32xf32, #tpu.memory_space<vmem>>, %arg3: memref<32x16xbf16, #tpu.memory_space<vmem>>, %arg4: memref<1x16xf32, #tpu.memory_space<vmem>>, %arg5: memref<48x16xbf16, #tpu.memory_space<vmem>>, %arg6: memref<1x16xf32, #tpu.memory_space<vmem>>, %arg7: memref<32x32xbf16, #tpu.memory_space<vmem>>, %arg8: memref<1x32xf32, #tpu.memory_space<vmem>>, %arg9: memref<2x8x32xf32, #tpu.memory_space<vmem>>) attributes {dimension_semantics = [#tpu.dimension_semantics<parallel>], iteration_bounds = array<i64: 2>, scalar_prefetch = 0 : i64, scratch_operands = 0 : i64, tpu.core_type = #tpu.core_type<tc>, window_params = [{transform_indices = @transform_0, window_bounds = array<i64: 2, 8, 8>}, {transform_indices = @transform_1, window_bounds = array<i64: 2, 8, 32>}, {pipeline_mode = #tpu.pipeline_mode<synchronous>, transform_indices = @transform_2, window_bounds = array<i64: 32, 16>}, {pipeline_mode = #tpu.pipeline_mode<synchronous>, transform_indices = @transform_3, window_bounds = array<i64: 1, 16>}, {pipeline_mode = #tpu.pipeline_mode<synchronous>, transform_indices = @transform_4, window_bounds = array<i64: 48, 16>}, {pipeline_mode = #tpu.pipeline_mode<synchronous>, transform_indices = @transform_5, window_bounds = array<i64: 1, 16>}, {pipeline_mode = #tpu.pipeline_mode<synchronous>, transform_indices = @transform_6, window_bounds = array<i64: 32, 32>}, {pipeline_mode = #tpu.pipeline_mode<synchronous>, transform_indices = @transform_7, window_bounds = array<i64: 1, 32>}, {transform_indices = @transform_8, window_bounds = array<i64: 2, 8, 32>}]} {
    %c0 = arith.constant 0 : index
    %c0_0 = arith.constant 0 : index
    %c0_1 = arith.constant 0 : index
    %0 = vector.load %arg1[%c0, %c0_0, %c0_1] : memref<2x8x8xbf16, #tpu.memory_space<vmem>>, vector<2x8x8xbf16>
    %c0_2 = arith.constant 0 : index
    %c0_3 = arith.constant 0 : index
    %c0_4 = arith.constant 0 : index
    %1 = vector.load %arg2[%c0_2, %c0_3, %c0_4] : memref<2x8x32xf32, #tpu.memory_space<vmem>>, vector<2x8x32xf32>
    %2 = vector.shape_cast %1 : vector<2x8x32xf32> to vector<16x32xf32>
    %3 = arith.extf %0 : vector<2x8x8xbf16> to vector<2x8x8xf32>
    %cst = arith.constant dense<0.000000e+00> : vector<2x8xf32>
    %4 = vector.multi_reduction <add>, %3, %cst [2] : vector<2x8x8xf32> to vector<2x8xf32>
    %5 = vector.shape_cast %4 : vector<2x8xf32> to vector<2x8x1xf32>
    %6 = arith.truncf %5 : vector<2x8x1xf32> to vector<2x8x1xbf16>
    %7 = arith.extf %6 : vector<2x8x1xbf16> to vector<2x8x1xf32>
    %cst_5 = arith.constant 1.000000e+00 : f32
    %8 = vector.broadcast %cst_5 : f32 to vector<2x8x1xf32>
    %9 = arith.addf %7, %8 : vector<2x8x1xf32>
    %10 = tpu.reciprocal %9 {approx = true} : vector<2x8x1xf32> -> vector<2x8x1xf32>
    %11 = vector.shape_cast %10 : vector<2x8x1xf32> to vector<16x1xf32>
    %12 = vector.shape_cast %11 : vector<16x1xf32> to vector<16x1xf32>
    %13 = vector.broadcast %12 : vector<16x1xf32> to vector<16x16xf32>
    %14 = arith.extf %0 : vector<2x8x8xbf16> to vector<2x8x8xf32>
    %15 = vector.shape_cast %14 : vector<2x8x8xf32> to vector<2x8x8x1xf32>
    %16 = arith.truncf %1 : vector<2x8x32xf32> to vector<2x8x32xbf16>
    %17 = arith.extf %16 : vector<2x8x32xbf16> to vector<2x8x32xf32>
    %18 = vector.shape_cast %17 : vector<2x8x32xf32> to vector<2x1x8x32xf32>
    %19 = vector.broadcast %15 : vector<2x8x8x1xf32> to vector<2x8x8x32xf32>
    %20 = vector.broadcast %18 : vector<2x1x8x32xf32> to vector<2x8x8x32xf32>
    %21 = arith.mulf %19, %20 : vector<2x8x8x32xf32>
    %cst_6 = arith.constant dense<0.000000e+00> : vector<2x8x32xf32>
    %22 = vector.multi_reduction <add>, %21, %cst_6 [2] : vector<2x8x8x32xf32> to vector<2x8x32xf32>
    %23 = arith.truncf %22 : vector<2x8x32xf32> to vector<2x8x32xbf16>
    %24 = vector.shape_cast %23 : vector<2x8x32xbf16> to vector<16x32xbf16>
    %c0_7 = arith.constant 0 : index
    %c0_8 = arith.constant 0 : index
    %25 = vector.load %arg3[%c0_7, %c0_8] : memref<32x16xbf16, #tpu.memory_space<vmem>>, vector<32x16xbf16>
    %c0_9 = arith.constant 0 : index
    %c0_10 = arith.constant 0 : index
    %26 = vector.load %arg4[%c0_9, %c0_10] : memref<1x16xf32, #tpu.memory_space<vmem>>, vector<1x16xf32>
    %cst_11 = arith.constant dense<0.000000e+00> : vector<16x16xf32>
    %27 = tpu.matmul %24, %25, %cst_11 {dimension_numbers = #tpu.dot_dimension_numbers<[1], [0], [0], [1], [0, 0, 1, 1], [], []>} : vector<16x32xbf16>, vector<32x16xbf16>, vector<16x16xf32> -> vector<16x16xf32>
    %28 = vector.broadcast %26 : vector<1x16xf32> to vector<16x16xf32>
    %29 = arith.addf %27, %28 : vector<16x16xf32>
    %30 = arith.mulf %29, %13 : vector<16x16xf32>
    %cst_12 = arith.constant 0.000000e+00 : f32
    %31 = vector.broadcast %cst_12 : f32 to vector<16x16xf32>
    %32 = arith.maximumf %30, %31 : vector<16x16xf32>
    %33 = arith.truncf %32 : vector<16x16xf32> to vector<16x16xbf16>
    %34 = vector.shape_cast %33 : vector<16x16xbf16> to vector<2x8x16xbf16>
    %35 = arith.extf %34 : vector<2x8x16xbf16> to vector<2x8x16xf32>
    %36 = vector.shape_cast %35 : vector<2x8x16xf32> to vector<2x1x8x16xf32>
    %37 = vector.broadcast %15 : vector<2x8x8x1xf32> to vector<2x8x8x16xf32>
    %38 = vector.broadcast %36 : vector<2x1x8x16xf32> to vector<2x8x8x16xf32>
    %39 = arith.mulf %37, %38 : vector<2x8x8x16xf32>
    %cst_13 = arith.constant dense<0.000000e+00> : vector<2x8x16xf32>
    %40 = vector.multi_reduction <add>, %39, %cst_13 [2] : vector<2x8x8x16xf32> to vector<2x8x16xf32>
    %41 = arith.truncf %40 : vector<2x8x16xf32> to vector<2x8x16xbf16>
    %42 = vector.shape_cast %41 : vector<2x8x16xbf16> to vector<16x16xbf16>
    %c0_14 = arith.constant 0 : index
    %c0_15 = arith.constant 0 : index
    %43 = vector.load %arg5[%c0_14, %c0_15] : memref<48x16xbf16, #tpu.memory_space<vmem>>, vector<48x16xbf16>
    %c0_16 = arith.constant 0 : index
    %c0_17 = arith.constant 0 : index
    %44 = vector.load %arg6[%c0_16, %c0_17] : memref<1x16xf32, #tpu.memory_space<vmem>>, vector<1x16xf32>
    %45 = vector.extract_strided_slice %43 {offsets = [0, 0], sizes = [32, 16], strides = [1, 1]} : vector<48x16xbf16> to vector<32x16xbf16>
    %cst_18 = arith.constant dense<0.000000e+00> : vector<16x16xf32>
    %46 = tpu.matmul %24, %45, %cst_18 {dimension_numbers = #tpu.dot_dimension_numbers<[1], [0], [0], [1], [0, 0, 1, 1], [], []>} : vector<16x32xbf16>, vector<32x16xbf16>, vector<16x16xf32> -> vector<16x16xf32>
    %47 = vector.extract_strided_slice %43 {offsets = [32, 0], sizes = [16, 16], strides = [1, 1]} : vector<48x16xbf16> to vector<16x16xbf16>
    %cst_19 = arith.constant dense<0.000000e+00> : vector<16x16xf32>
    %48 = tpu.matmul %42, %47, %cst_19 {dimension_numbers = #tpu.dot_dimension_numbers<[1], [0], [0], [1], [0, 0, 1, 1], [], []>} : vector<16x16xbf16>, vector<16x16xbf16>, vector<16x16xf32> -> vector<16x16xf32>
    %49 = arith.addf %46, %48 : vector<16x16xf32>
    %50 = vector.broadcast %44 : vector<1x16xf32> to vector<16x16xf32>
    %51 = arith.addf %49, %50 : vector<16x16xf32>
    %52 = arith.mulf %51, %13 : vector<16x16xf32>
    %cst_20 = arith.constant 0.000000e+00 : f32
    %53 = vector.broadcast %cst_20 : f32 to vector<16x16xf32>
    %54 = arith.maximumf %52, %53 : vector<16x16xf32>
    %55 = tpu.concatenate %32, %54 in 1 : vector<16x16xf32>, vector<16x16xf32> -> vector<16x32xf32>
    %56 = arith.addf %55, %2 : vector<16x32xf32>
    %c0_21 = arith.constant 0 : index
    %c0_22 = arith.constant 0 : index
    %57 = vector.load %arg7[%c0_21, %c0_22] : memref<32x32xbf16, #tpu.memory_space<vmem>>, vector<32x32xbf16>
    %c0_23 = arith.constant 0 : index
    %c0_24 = arith.constant 0 : index
    %58 = vector.load %arg8[%c0_23, %c0_24] : memref<1x32xf32, #tpu.memory_space<vmem>>, vector<1x32xf32>
    %59 = arith.truncf %56 : vector<16x32xf32> to vector<16x32xbf16>
    %cst_25 = arith.constant dense<0.000000e+00> : vector<16x32xf32>
    %60 = tpu.matmul %59, %57, %cst_25 {dimension_numbers = #tpu.dot_dimension_numbers<[1], [0], [0], [1], [0, 0, 1, 1], [], []>} : vector<16x32xbf16>, vector<32x32xbf16>, vector<16x32xf32> -> vector<16x32xf32>
    %61 = vector.broadcast %58 : vector<1x32xf32> to vector<16x32xf32>
    %62 = arith.addf %60, %61 : vector<16x32xf32>
    %63 = vector.shape_cast %62 : vector<16x32xf32> to vector<2x8x32xf32>
    %c0_26 = arith.constant 0 : index
    %c0_27 = arith.constant 0 : index
    %c0_28 = arith.constant 0 : index
    %64 = vector.load %arg9[%c0_26, %c0_27, %c0_28] : memref<2x8x32xf32, #tpu.memory_space<vmem>>, vector<2x8x32xf32>
    tpu.vector_store %arg9[%c0_26, %c0_27, %c0_28], %63 {strides = array<i32>} : memref<2x8x32xf32, #tpu.memory_space<vmem>>, vector<2x8x32xf32>,
    return
  }
  func.func @transform_0(%arg0: i32) -> (i32, i32, i32) {
    %c0_i32 = arith.constant 0 : i32
    %c0_i32_0 = arith.constant 0 : i32
    %c0_i32_1 = arith.constant 0 : i32
    return %arg0, %c0_i32, %c0_i32_0 : i32, i32, i32
  }
  func.func @transform_1(%arg0: i32) -> (i32, i32, i32) {
    %c0_i32 = arith.constant 0 : i32
    %c0_i32_0 = arith.constant 0 : i32
    %c0_i32_1 = arith.constant 0 : i32
    return %arg0, %c0_i32, %c0_i32_0 : i32, i32, i32
  }
  func.func @transform_2(%arg0: i32) -> (i32, i32) {
    %c0_i32 = arith.constant 0 : i32
    %c0_i32_0 = arith.constant 0 : i32
    %c0_i32_1 = arith.constant 0 : i32
    return %c0_i32, %c0_i32_0 : i32, i32
  }
  func.func @transform_3(%arg0: i32) -> (i32, i32) {
    %c0_i32 = arith.constant 0 : i32
    %c0_i32_0 = arith.constant 0 : i32
    %c0_i32_1 = arith.constant 0 : i32
    return %c0_i32, %c0_i32_0 : i32, i32
  }
  func.func @transform_4(%arg0: i32) -> (i32, i32) {
    %c0_i32 = arith.constant 0 : i32
    %c0_i32_0 = arith.constant 0 : i32
    %c0_i32_1 = arith.constant 0 : i32
    return %c0_i32, %c0_i32_0 : i32, i32
  }
  func.func @transform_5(%arg0: i32) -> (i32, i32) {
    %c0_i32 = arith.constant 0 : i32
    %c0_i32_0 = arith.constant 0 : i32
    %c0_i32_1 = arith.constant 0 : i32
    return %c0_i32, %c0_i32_0 : i32, i32
  }
  func.func @transform_6(%arg0: i32) -> (i32, i32) {
    %c0_i32 = arith.constant 0 : i32
    %c0_i32_0 = arith.constant 0 : i32
    %c0_i32_1 = arith.constant 0 : i32
    return %c0_i32, %c0_i32_0 : i32, i32
  }
  func.func @transform_7(%arg0: i32) -> (i32, i32) {
    %c0_i32 = arith.constant 0 : i32
    %c0_i32_0 = arith.constant 0 : i32
    %c0_i32_1 = arith.constant 0 : i32
    return %c0_i32, %c0_i32_0 : i32, i32
  }
  func.func @transform_8(%arg0: i32) -> (i32, i32, i32) {
    %c0_i32 = arith.constant 0 : i32
    %c0_i32_0 = arith.constant 0 : i32
    %c0_i32_1 = arith.constant 0 : i32
    return %arg0, %c0_i32, %c0_i32_0 : i32, i32, i32
  }
}

</mosaic_0001>

<llo_original>
// kernel: tpu_custom_call.1
$region0: #{tpu_custom_call.1}
  #allocation0 [shape = 'u32[]', space=smem, size = 0x4, offset = 0x4, fixed_abs, tag = 'smem constant byte address 0x4 - core index']
  #allocation1 [shape = 'u32[144,128]{1,0:T(1,128)}', space=vmem, size = 0x12000, scoped, tag = 'internal scratch']
  %s0 = inlined_call_operand.vmem [shape: bf16[4,8,8], index: 0, kind: input, shape index: {}]
  %s1 = inlined_call_operand.vmem [shape: f32[4,8,32], index: 1, kind: input, shape index: {}]
  %s2 = inlined_call_operand.vmem [shape: bf16[32,16], index: 2, kind: input, shape index: {}]
  %s3 = inlined_call_operand.vmem [shape: f32[1,16], index: 3, kind: input, shape index: {}]
  %s4 = inlined_call_operand.vmem [shape: bf16[48,16], index: 4, kind: input, shape index: {}]
  %s5 = inlined_call_operand.hbm [shape: f32[1,16], index: 5, kind: input, shape index: {}]
  %s6 = inlined_call_operand.vmem [shape: bf16[32,32], index: 6, kind: input, shape index: {}]
  %s7 = inlined_call_operand.vmem [shape: f32[1,32], index: 7, kind: input, shape index: {}]
  %s8 = inlined_call_operand.hbm [shape: f32[4,8,32], index: 8, kind: output, shape index: {}]
  %s9 = sld [smem:[#allocation0]]
  $region69: #{tpu_custom_call.1} parent=0
    _
  %s11 = ssub.s32 1, %s9
  %s12 = scalar_select 0, %s11, %s9
  $region1: #{tpu_custom_call.1} parent=0
    #allocation2 [shape = 'u8[512]{0}', space=vmem, size = 0x400, scoped, tag = 'input window, operand 5, single buffered']
    #allocation3 [shape = 's32[2]{0}', space=sflag, size = 0x8, scoped, tag = 'scoped memory for tpu_custom_call.1']
    #allocation4 [shape = 's32[2]{0}', space=sflag, size = 0x8, scoped, tag = 'scoped memory for tpu_custom_call.1']
    #allocation5 [shape = 'u8[16384]{0}', space=vmem, size = 0x4000, scoped, tag = 'output window, operand 0']
    %13 = vsyncpa [#allocation3], 0
    %14 = vsyncpa [#allocation4], 0
    %s15 = scalar_lea.sflag [#allocation4], 1
    %16 = vsyncpa %s15, 0
    loop: start=0, step=1, limit=4
    $region2: #{tpu_custom_call.1} parent=1 // loop_pre_header
      _
    $region3: #{tpu_custom_call.1} parent=1 // loop_header
      %s18 = sphi 0, %s22
      %p19 = scmp.ge.s32.totalorder %s18, 4
      %s28 = sphi 0, %s30
      %s31 = sphi 0, %s28
      %s32 = sphi 0, %s31
      %s48 = sphi 0, %s32
      %s54 = sphi 0, %s56
      %s57 = sphi 0, %s54
      %s58 = sphi 0, %s57
      %s74 = sphi 0, %s58
      %s78 = sphi 0, %s78
      %s80 = sphi 0, %s78
      %s81 = sphi 0, %s80
      %s95 = sphi 0, %s81
      %s99 = sphi 0, %s99
      %s101 = sphi 0, %s99
      %s102 = sphi 0, %s101
      %s116 = sphi 0, %s102
      %s120 = sphi 0, %s120
      %s122 = sphi 0, %s120
      %s123 = sphi 0, %s122
      %s137 = sphi 0, %s123
      %s141 = sphi 0, %s141
      %s143 = sphi 0, %s141
      %s144 = sphi 0, %s143
      %s158 = sphi 0, %s144
      %s162 = sphi 0, %s162
      %s164 = sphi 0, %s162
      %s165 = sphi 0, %s164
      %s179 = sphi 0, %s165
      %s183 = sphi 0, %s183
      %s185 = sphi 0, %s183
      %s186 = sphi 0, %s185
      %s200 = sphi 0, %s186
      %s206 = sphi 0, %s208
      %s209 = sphi 0, %s206
      %s210 = sphi 0, %s209
      %s226 = sphi 0, %s210
    $region4: #{tpu_custom_call.1} parent=1 // loop_header_branch
      %21 = sbr.rel (%p19) target = $region8
    $region5: #{tpu_custom_call.1} parent=1 // loop_body
      %s23 = ssub.s32 %s18, 1
      %s24 = ssub.s32 %s18, 2
      %s25 = sadd.s32 %s18, 1
      %s26 = ssub.s32 %s18, %s25
      %p27 = scmp.eq.s32.totalorder %s26, 0
      %s29 = sadd.s32 %s28, 1
      %s30 = scalar_select %p27, %s28, %s29
      %p33 = pneg %p27
      %p34 = scmp.eq.s32.totalorder %s18, 1
      %p35 = por %p33, %p34
      %p36 = scmp.ne.s32.totalorder %s28, %s31
      %p37 = scmp.eq.s32.totalorder %s18, 0
      %p38 = por %p36, %p37
      %p39 = scmp.ne.s32.totalorder %s28, %s31
      %p40 = scmp.eq.s32.totalorder %s23, 1
      %p41 = por %p39, %p40
      %p42 = scmp.ne.s32.totalorder %s31, %s32
      %p43 = scmp.eq.s32.totalorder %s23, 0
      %p44 = por %p42, %p43
      %p45 = scmp.ne.s32.totalorder %s31, %s32
      %p46 = scmp.eq.s32.totalorder %s24, 1
      %p47 = por %p45, %p46
      %p49 = scmp.ne.s32.totalorder %s32, %s48
      %p50 = scmp.eq.s32.totalorder %s24, 0
      %p51 = por %p49, %p50
      %s52 = ssub.s32 %s18, %s25
      %p53 = scmp.eq.s32.totalorder %s52, 0
      %s55 = sadd.s32 %s54, 1
      %s56 = scalar_select %p53, %s54, %s55
      %p59 = pneg %p53
      %p60 = scmp.eq.s32.totalorder %s18, 1
      %p61 = por %p59, %p60
      %p62 = scmp.ne.s32.totalorder %s54, %s57
      %p63 = scmp.eq.s32.totalorder %s18, 0
      %p64 = por %p62, %p63
      %p65 = scmp.ne.s32.totalorder %s54, %s57
      %p66 = scmp.eq.s32.totalorder %s23, 1
      %p67 = por %p65, %p66
      %p68 = scmp.ne.s32.totalorder %s57, %s58
      %p69 = scmp.eq.s32.totalorder %s23, 0
      %p70 = por %p68, %p69
      %p71 = scmp.ne.s32.totalorder %s57, %s58
      %p72 = scmp.eq.s32.totalorder %s24, 1
      %p73 = por %p71, %p72
      %p75 = scmp.ne.s32.totalorder %s58, %s74
      %p76 = scmp.eq.s32.totalorder %s24, 0
      %p77 = por %p75, %p76
      %s79 = sadd.s32 %s78, 1
      %p82 = scmp.eq.s32.totalorder %s18, 1
      %p83 = scmp.ne.s32.totalorder %s78, %s80
      %p84 = scmp.eq.s32.totalorder %s18, 0
      %p85 = por %p83, %p84
      %p86 = scmp.ne.s32.totalorder %s78, %s80
      %p87 = scmp.eq.s32.totalorder %s23, 1
      %p88 = por %p86, %p87
      %p89 = scmp.ne.s32.totalorder %s80, %s81
      %p90 = scmp.eq.s32.totalorder %s23, 0
      %p91 = por %p89, %p90
      %p92 = scmp.ne.s32.totalorder %s80, %s81
      %p93 = scmp.eq.s32.totalorder %s24, 1
      %p94 = por %p92, %p93
      %p96 = scmp.ne.s32.totalorder %s81, %s95
      %p97 = scmp.eq.s32.totalorder %s24, 0
      %p98 = por %p96, %p97
      %s100 = sadd.s32 %s99, 1
      %p103 = scmp.eq.s32.totalorder %s18, 1
      %p104 = scmp.ne.s32.totalorder %s99, %s101
      %p105 = scmp.eq.s32.totalorder %s18, 0
      %p106 = por %p104, %p105
      %p107 = scmp.ne.s32.totalorder %s99, %s101
      %p108 = scmp.eq.s32.totalorder %s23, 1
      %p109 = por %p107, %p108
      %p110 = scmp.ne.s32.totalorder %s101, %s102
      %p111 = scmp.eq.s32.totalorder %s23, 0
      %p112 = por %p110, %p111
      %p113 = scmp.ne.s32.totalorder %s101, %s102
      %p114 = scmp.eq.s32.totalorder %s24, 1
      %p115 = por %p113, %p114
      %p117 = scmp.ne.s32.totalorder %s102, %s116
      %p118 = scmp.eq.s32.totalorder %s24, 0
      %p119 = por %p117, %p118
      %s121 = sadd.s32 %s120, 1
      %p124 = scmp.eq.s32.totalorder %s18, 1
      %p125 = scmp.ne.s32.totalorder %s120, %s122
      %p126 = scmp.eq.s32.totalorder %s18, 0
      %p127 = por %p125, %p126
      %p128 = scmp.ne.s32.totalorder %s120, %s122
      %p129 = scmp.eq.s32.totalorder %s23, 1
      %p130 = por %p128, %p129
      %p131 = scmp.ne.s32.totalorder %s122, %s123
      %p132 = scmp.eq.s32.totalorder %s23, 0
      %p133 = por %p131, %p132
      %p134 = scmp.ne.s32.totalorder %s122, %s123
      %p135 = scmp.eq.s32.totalorder %s24, 1
      %p136 = por %p134, %p135
      %p138 = scmp.ne.s32.totalorder %s123, %s137
      %p139 = scmp.eq.s32.totalorder %s24, 0
      %p140 = por %p138, %p139
      %s142 = sadd.s32 %s141, 1
      %p145 = scmp.eq.s32.totalorder %s18, 1
      %p146 = scmp.ne.s32.totalorder %s141, %s143
      %p147 = scmp.eq.s32.totalorder %s18, 0
      %p148 = por %p146, %p147
      %p149 = scmp.ne.s32.totalorder %s141, %s143
      %p150 = scmp.eq.s32.totalorder %s23, 1
      %p151 = por %p149, %p150
      %p152 = scmp.ne.s32.totalorder %s143, %s144
      %p153 = scmp.eq.s32.totalorder %s23, 0
      %p154 = por %p152, %p153
      %p155 = scmp.ne.s32.totalorder %s143, %s144
      %p156 = scmp.eq.s32.totalorder %s24, 1
      %p157 = por %p155, %p156
      %p159 = scmp.ne.s32.totalorder %s144, %s158
      %p160 = scmp.eq.s32.totalorder %s24, 0
      %p161 = por %p159, %p160
      %s163 = sadd.s32 %s162, 1
      %p166 = scmp.eq.s32.totalorder %s18, 1
      %p167 = scmp.ne.s32.totalorder %s162, %s164
      %p168 = scmp.eq.s32.totalorder %s18, 0
      %p169 = por %p167, %p168
      %p170 = scmp.ne.s32.totalorder %s162, %s164
      %p171 = scmp.eq.s32.totalorder %s23, 1
      %p172 = por %p170, %p171
      %p173 = scmp.ne.s32.totalorder %s164, %s165
      %p174 = scmp.eq.s32.totalorder %s23, 0
      %p175 = por %p173, %p174
      %p176 = scmp.ne.s32.totalorder %s164, %s165
      %p177 = scmp.eq.s32.totalorder %s24, 1
      %p178 = por %p176, %p177
      %p180 = scmp.ne.s32.totalorder %s165, %s179
      %p181 = scmp.eq.s32.totalorder %s24, 0
      %p182 = por %p180, %p181
      %s184 = sadd.s32 %s183, 1
      %p187 = scmp.eq.s32.totalorder %s18, 1
      %p188 = scmp.ne.s32.totalorder %s183, %s185
      %p189 = scmp.eq.s32.totalorder %s18, 0
      %p190 = por %p188, %p189
      %p191 = scmp.ne.s32.totalorder %s183, %s185
      %p192 = scmp.eq.s32.totalorder %s23, 1
      %p193 = por %p191, %p192
      %p194 = scmp.ne.s32.totalorder %s185, %s186
      %p195 = scmp.eq.s32.totalorder %s23, 0
      %p196 = por %p194, %p195
      %p197 = scmp.ne.s32.totalorder %s185, %s186
      %p198 = scmp.eq.s32.totalorder %s24, 1
      %p199 = por %p197, %p198
      %p201 = scmp.ne.s32.totalorder %s186, %s200
      %p202 = scmp.eq.s32.totalorder %s24, 0
      %p203 = por %p201, %p202
      %s204 = ssub.s32 %s18, %s25
      %p205 = scmp.eq.s32.totalorder %s204, 0
      %s207 = sadd.s32 %s206, 1
      %s208 = scalar_select %p205, %s206, %s207
      %p211 = pneg %p205
      %p212 = scmp.eq.s32.totalorder %s18, 1
      %p213 = por %p211, %p212
      %p214 = scmp.ne.s32.totalorder %s206, %s209
      %p215 = scmp.eq.s32.totalorder %s18, 0
      %p216 = por %p214, %p215
      %p217 = scmp.ne.s32.totalorder %s206, %s209
      %p218 = scmp.eq.s32.totalorder %s23, 1
      %p219 = por %p217, %p218
      %p220 = scmp.ne.s32.totalorder %s209, %s210
      %p221 = scmp.eq.s32.totalorder %s23, 0
      %p222 = por %p220, %p221
      %p223 = scmp.ne.s32.totalorder %s209, %s210
      %p224 = scmp.eq.s32.totalorder %s24, 1
      %p225 = por %p223, %p224
      %p227 = scmp.ne.s32.totalorder %s210, %s226
      %p228 = scmp.eq.s32.totalorder %s24, 0
      %p229 = por %p227, %p228
      %p230 = scmp.le.s32.totalorder 1, %s18
      %p231 = scmp.lt.s32.totalorder %s18, 3
      %p232 = pnand %p230, %p231
      %p233 = pneg %p232
      // Predicated region
      $region9: #{tpu_custom_call.1} parent=5 // pred_check
        _
      $region10: #{tpu_custom_call.1} parent=5 // pred_check_branch
        %235 = sbr.rel (%p232) target = $region12
      $region11: #{tpu_custom_call.1} parent=5 // pred_region
        %s236 = ssub.s32 %s18, 1
        // Predicated region
        $region13: #{tpu_custom_call.1} parent=11 // pred_check
          %p237 = pneg %p91
        $region14: #{tpu_custom_call.1} parent=11 // pred_check_branch
          %239 = sbr.rel (%p237) target = $region16
        $region15: #{tpu_custom_call.1} parent=11 // pred_region
          _
        $region16: #{tpu_custom_call.1} parent=11 // pred_fallthru
          _
        // Predicated region
        $region17: #{tpu_custom_call.1} parent=11 // pred_check
          %p240 = pneg %p112
        $region18: #{tpu_custom_call.1} parent=11 // pred_check_branch
          %242 = sbr.rel (%p240) target = $region20
        $region19: #{tpu_custom_call.1} parent=11 // pred_region
          _
        $region20: #{tpu_custom_call.1} parent=11 // pred_fallthru
          _
        // Predicated region
        $region21: #{tpu_custom_call.1} parent=11 // pred_check
          %p243 = pneg %p133
        $region22: #{tpu_custom_call.1} parent=11 // pred_check_branch
          %245 = sbr.rel (%p243) target = $region24
        $region23: #{tpu_custom_call.1} parent=11 // pred_region
          _
        $region24: #{tpu_custom_call.1} parent=11 // pred_fallthru
          _
        // Predicated region
        $region25: #{tpu_custom_call.1} parent=11 // pred_check
          %p246 = pneg %p154
        $region26: #{tpu_custom_call.1} parent=11 // pred_check_branch
          %248 = sbr.rel (%p246) target = $region28
        $region27: #{tpu_custom_call.1} parent=11 // pred_region
          %s250 = ssub.s32 16, 16
          %251 = vsyncadd [#allocation3], %s250
          %s253 = sshll.u32 [#allocation2], 4
          %s254 = int_to_ptr.vmem [resolvable:$true] %s253
          %256 = dma.hbm_to_vmem [thread:$0]  %s5, 16, %s254, [#allocation3]
        $region28: #{tpu_custom_call.1} parent=11 // pred_fallthru
          _
        // Predicated region
        $region29: #{tpu_custom_call.1} parent=11 // pred_check
          %p257 = pneg %p175
        $region30: #{tpu_custom_call.1} parent=11 // pred_check_branch
          %259 = sbr.rel (%p257) target = $region32
        $region31: #{tpu_custom_call.1} parent=11 // pred_region
          _
        $region32: #{tpu_custom_call.1} parent=11 // pred_fallthru
          _
        // Predicated region
        $region33: #{tpu_custom_call.1} parent=11 // pred_check
          %p260 = pneg %p196
        $region34: #{tpu_custom_call.1} parent=11 // pred_check_branch
          %262 = sbr.rel (%p260) target = $region36
        $region35: #{tpu_custom_call.1} parent=11 // pred_region
          _
        $region36: #{tpu_custom_call.1} parent=11 // pred_fallthru
          _
      $region12: #{tpu_custom_call.1} parent=5 // pred_fallthru
        _
      %p263 = scmp.lt.s32.totalorder %s18, 2
      // Predicated region
      $region37: #{tpu_custom_call.1} parent=5 // pred_check
        %p264 = pneg %p263
      $region38: #{tpu_custom_call.1} parent=5 // pred_check_branch
        %266 = sbr.rel (%p264) target = $region40
      $region39: #{tpu_custom_call.1} parent=5 // pred_region
        // Predicated region
        $region41: #{tpu_custom_call.1} parent=39 // pred_check
          %p267 = pneg %p38
        $region42: #{tpu_custom_call.1} parent=39 // pred_check_branch
          %269 = sbr.rel (%p267) target = $region44
        $region43: #{tpu_custom_call.1} parent=39 // pred_region
          %s270 = smul.u32 2, %s18
          %p271 = scmp.lt.s32.totalorder %s270, 3
          %s272 = scalar_select %p271, %s270, 3
          %s273 = smul.addr %s272, 4
          %s274 = scalar_lea.vmem %s0, %s273
          %s275 = smul.u32 2, %s18
        $region44: #{tpu_custom_call.1} parent=39 // pred_fallthru
          _
        // Predicated region
        $region45: #{tpu_custom_call.1} parent=39 // pred_check
          %p276 = pneg %p64
        $region46: #{tpu_custom_call.1} parent=39 // pred_check_branch
          %278 = sbr.rel (%p276) target = $region48
        $region47: #{tpu_custom_call.1} parent=39 // pred_region
          %s279 = smul.u32 2, %s18
          %p280 = scmp.lt.s32.totalorder %s279, 3
          %s281 = scalar_select %p280, %s279, 3
          %s282 = smul.addr %s281, 8
          %s283 = scalar_lea.vmem %s1, %s282
          %s284 = smul.u32 2, %s18
        $region48: #{tpu_custom_call.1} parent=39 // pred_fallthru
          _
      $region40: #{tpu_custom_call.1} parent=5 // pred_fallthru
        _
      %p285 = scmp.le.s32.totalorder 1, %s18
      %p286 = scmp.lt.s32.totalorder %s18, 3
      %p287 = pnand %p285, %p286
      %p288 = pneg %p287
      // Predicated region
      $region49: #{tpu_custom_call.1} parent=5 // pred_check
        _
      $region50: #{tpu_custom_call.1} parent=5 // pred_check_branch
        %290 = sbr.rel (%p287) target = $region52
      $region51: #{tpu_custom_call.1} parent=5 // pred_region
        %s291 = ssub.s32 %s18, 1
        // Predicated region
        $region53: #{tpu_custom_call.1} parent=51 // pred_check
          %p292 = pneg %p154
        $region54: #{tpu_custom_call.1} parent=51 // pred_check_branch
          %294 = sbr.rel (%p292) target = $region56
        $region55: #{tpu_custom_call.1} parent=51 // pred_region
          %295 = dma.done [#allocation3], 16
        $region56: #{tpu_custom_call.1} parent=51 // pred_fallthru
          _
        %s296 = smul.u32 2, %s23
        %p297 = scmp.lt.s32.totalorder %s296, 3
        %s298 = scalar_select %p297, %s296, 3
        %s299 = smul.addr %s298, 4
        %s300 = scalar_lea.vmem %s0, %s299
        %p301 = pneg %p44
        %p302 = pneg %p41
        %s303 = smul.u32 2, %s23
        %p304 = scmp.lt.s32.totalorder %s303, 3
        %s305 = scalar_select %p304, %s303, 3
        %s306 = smul.addr %s305, 8
        %s307 = scalar_lea.vmem %s1, %s306
        %p308 = pneg %p70
        %p309 = pneg %p67
        %p310 = pneg %p91
        %p311 = pneg %p88
        %p312 = pneg %p112
        %p313 = pneg %p109
        %p314 = pneg %p133
        %p315 = pneg %p130
        %p316 = pneg %p154
        %p317 = pneg %p151
        %p318 = pneg %p175
        %p319 = pneg %p172
        %p320 = pneg %p196
        %p321 = pneg %p193
        %p322 = pneg %p222
        %p323 = pneg %p219
        %s324 = sand.u32 %s209, 1
        %s325 = scalar_lea.sflag [#allocation4], %s324
        %s326 = sand.u32 %s209, 1
        %s327 = smul.addr %s326, 16
        %s328 = scalar_lea.vmem [#allocation5], %s327
        %s329 = smul.u32 2, %s23
        %p330 = scmp.lt.s32.totalorder %s329, 3
        %s331 = scalar_select %p330, %s329, 3
        %s332 = smul.addr %s331, 4
        %s333 = scalar_lea.vmem %s0, %s332
        %s334 = smul.u32 2, %s23
        %s335 = smul.u32 2, %s23
        %p336 = scmp.lt.s32.totalorder %s335, 3
        %s337 = scalar_select %p336, %s335, 3
        %s338 = smul.addr %s337, 8
        %s339 = scalar_lea.vmem %s1, %s338
        %s340 = smul.u32 2, %s23
        %s341 = smul.u32 2, %s23
        %v343 = vld [vmem:[%s333] sm:$0xf]
        %v344 = vld [vmem:[%s333 + $0x4] sm:$0xf]
        %v345 = vld [vmem:[%s339] sm:$0xff]
        %v346 = vld [vmem:[%s339 + $0x8] sm:$0xff]
        %v347 = vunpack.c.l.bf16 %v343
        %v348 = vunpack.c.l.bf16 %v344
        %vm349 = vcmask 64512
        %v350 = vsel %vm349, %v347, 0.0
        %351 = vadd.xlane.f32.xlu0 %v350
        %v352 = vpop.xlane.xlu0 %351
        %v353 = vsel %vm349, %v348, 0.0
        %354 = vadd.xlane.f32.xlu0 %v353
        %v355 = vpop.xlane.xlu0 %354
        %v356 = vpack.c.bf16 %v352, %v352
        %v357 = vpack.c.bf16 %v355, %v355
        %v358 = vunpack.c.l.bf16 %v356
        %v359 = vunpack.c.l.bf16 %v357
        %v360 = vadd.f32 %v358, 1.0
        %v361 = vadd.f32 %v359, 1.0
        %v362 = vrcp.pop %v360
        %v363 = vrcp.pop %v361
        %v364 = vlaneseq
        %v365 = vshrl.u32 %v364, 7
        %v366 = vsub.s32 0, %v365
        %v367 = vrot.slane %v347, %v366
        %369 = vbcast.lane.b32.xlu0 %v367, 256
        %v370 = vpop.permute.xlu0 %369
        %v371 = vlaneseq
        %v372 = vshrl.u32 %v371, 7
        %v373 = vsub.s32 1, %v372
        %v374 = vrot.slane %v347, %v373
        %376 = vbcast.lane.b32.xlu0 %v374, 256
        %v377 = vpop.permute.xlu0 %376
        %v378 = vlaneseq
        %v379 = vshrl.u32 %v378, 7
        %v380 = vsub.s32 2, %v379
        %v381 = vrot.slane %v347, %v380
        %383 = vbcast.lane.b32.xlu0 %v381, 256
        %v384 = vpop.permute.xlu0 %383
        %v385 = vlaneseq
        %v386 = vshrl.u32 %v385, 7
        %v387 = vsub.s32 3, %v386
        %v388 = vrot.slane %v347, %v387
        %390 = vbcast.lane.b32.xlu0 %v388, 256
        %v391 = vpop.permute.xlu0 %390
        %v392 = vlaneseq
        %v393 = vshrl.u32 %v392, 7
        %v394 = vsub.s32 4, %v393
        %v395 = vrot.slane %v347, %v394
        %397 = vbcast.lane.b32.xlu0 %v395, 256
        %v398 = vpop.permute.xlu0 %397
        %v399 = vlaneseq
        %v400 = vshrl.u32 %v399, 7
        %v401 = vsub.s32 5, %v400
        %v402 = vrot.slane %v347, %v401
        %404 = vbcast.lane.b32.xlu0 %v402, 256
        %v405 = vpop.permute.xlu0 %404
        %v406 = vlaneseq
        %v407 = vshrl.u32 %v406, 7
        %v408 = vsub.s32 6, %v407
        %v409 = vrot.slane %v347, %v408
        %411 = vbcast.lane.b32.xlu0 %v409, 256
        %v412 = vpop.permute.xlu0 %411
        %v413 = vlaneseq
        %v414 = vshrl.u32 %v413, 7
        %v415 = vsub.s32 7, %v414
        %v416 = vrot.slane %v347, %v415
        %418 = vbcast.lane.b32.xlu0 %v416, 256
        %v419 = vpop.permute.xlu0 %418
        %v420 = vlaneseq
        %v421 = vshrl.u32 %v420, 7
        %v422 = vsub.s32 0, %v421
        %v423 = vrot.slane %v348, %v422
        %425 = vbcast.lane.b32.xlu0 %v423, 256
        %v426 = vpop.permute.xlu0 %425
        %v427 = vlaneseq
        %v428 = vshrl.u32 %v427, 7
        %v429 = vsub.s32 1, %v428
        %v430 = vrot.slane %v348, %v429
        %432 = vbcast.lane.b32.xlu0 %v430, 256
        %v433 = vpop.permute.xlu0 %432
        %v434 = vlaneseq
        %v435 = vshrl.u32 %v434, 7
        %v436 = vsub.s32 2, %v435
        %v437 = vrot.slane %v348, %v436
        %439 = vbcast.lane.b32.xlu0 %v437, 256
        %v440 = vpop.permute.xlu0 %439
        %v441 = vlaneseq
        %v442 = vshrl.u32 %v441, 7
        %v443 = vsub.s32 3, %v442
        %v444 = vrot.slane %v348, %v443
        %446 = vbcast.lane.b32.xlu0 %v444, 256
        %v447 = vpop.permute.xlu0 %446
        %v448 = vlaneseq
        %v449 = vshrl.u32 %v448, 7
        %v450 = vsub.s32 4, %v449
        %v451 = vrot.slane %v348, %v450
        %453 = vbcast.lane.b32.xlu0 %v451, 256
        %v454 = vpop.permute.xlu0 %453
        %v455 = vlaneseq
        %v456 = vshrl.u32 %v455, 7
        %v457 = vsub.s32 5, %v456
        %v458 = vrot.slane %v348, %v457
        %460 = vbcast.lane.b32.xlu0 %v458, 256
        %v461 = vpop.permute.xlu0 %460
        %v462 = vlaneseq
        %v463 = vshrl.u32 %v462, 7
        %v464 = vsub.s32 6, %v463
        %v465 = vrot.slane %v348, %v464
        %467 = vbcast.lane.b32.xlu0 %v465, 256
        %v468 = vpop.permute.xlu0 %467
        %v469 = vlaneseq
        %v470 = vshrl.u32 %v469, 7
        %v471 = vsub.s32 7, %v470
        %v472 = vrot.slane %v348, %v471
        %474 = vbcast.lane.b32.xlu0 %v472, 256
        %v475 = vpop.permute.xlu0 %474
        %v476 = vpack.c.bf16 %v345, %v345
        %v477 = vpack.c.bf16 %v346, %v346
        %v478 = vunpack.c.l.bf16 %v476
        %v479 = vunpack.c.l.bf16 %v477
        %v480 = vmul.f32 %v370, %v478
        %v481 = vmul.f32 %v377, %v478
        %v482 = vmul.f32 %v384, %v478
        %v483 = vmul.f32 %v391, %v478
        %v484 = vmul.f32 %v398, %v478
        %v485 = vmul.f32 %v405, %v478
        %v486 = vmul.f32 %v412, %v478
        %v487 = vmul.f32 %v419, %v478
        %v488 = vmul.f32 %v426, %v479
        %v489 = vmul.f32 %v433, %v479
        %v490 = vmul.f32 %v440, %v479
        %v491 = vmul.f32 %v447, %v479
        %v492 = vmul.f32 %v454, %v479
        %v493 = vmul.f32 %v461, %v479
        %v494 = vmul.f32 %v468, %v479
        %v495 = vmul.f32 %v475, %v479
        %vm496 = vcmask 261120
        %v497 = vsel %vm496, %v480, 0.0
        %v498 = vrot.slane %v497, 4
        %v499 = vadd.f32 %v497, %v498
        %v500 = vrot.slane %v499, 2
        %v501 = vadd.f32 %v499, %v500
        %v502 = vrot.slane %v501, 1
        %v503 = vadd.f32 %v501, %v502
        %v504 = vsel %vm496, %v481, 0.0
        %v505 = vrot.slane %v504, 4
        %v506 = vadd.f32 %v504, %v505
        %v507 = vrot.slane %v506, 2
        %v508 = vadd.f32 %v506, %v507
        %v509 = vrot.slane %v508, 1
        %v510 = vadd.f32 %v508, %v509
        %v511 = vsel %vm496, %v482, 0.0
        %v512 = vrot.slane %v511, 4
        %v513 = vadd.f32 %v511, %v512
        %v514 = vrot.slane %v513, 2
        %v515 = vadd.f32 %v513, %v514
        %v516 = vrot.slane %v515, 1
        %v517 = vadd.f32 %v515, %v516
        %v518 = vsel %vm496, %v483, 0.0
        %v519 = vrot.slane %v518, 4
        %v520 = vadd.f32 %v518, %v519
        %v521 = vrot.slane %v520, 2
        %v522 = vadd.f32 %v520, %v521
        %v523 = vrot.slane %v522, 1
        %v524 = vadd.f32 %v522, %v523
        %v525 = vsel %vm496, %v484, 0.0
        %v526 = vrot.slane %v525, 4
        %v527 = vadd.f32 %v525, %v526
        %v528 = vrot.slane %v527, 2
        %v529 = vadd.f32 %v527, %v528
        %v530 = vrot.slane %v529, 1
        %v531 = vadd.f32 %v529, %v530
        %v532 = vsel %vm496, %v485, 0.0
        %v533 = vrot.slane %v532, 4
        %v534 = vadd.f32 %v532, %v533
        %v535 = vrot.slane %v534, 2
        %v536 = vadd.f32 %v534, %v535
        %v537 = vrot.slane %v536, 1
        %v538 = vadd.f32 %v536, %v537
        %v539 = vsel %vm496, %v486, 0.0
        %v540 = vrot.slane %v539, 4
        %v541 = vadd.f32 %v539, %v540
        %v542 = vrot.slane %v541, 2
        %v543 = vadd.f32 %v541, %v542
        %v544 = vrot.slane %v543, 1
        %v545 = vadd.f32 %v543, %v544
        %v546 = vsel %vm496, %v487, 0.0
        %v547 = vrot.slane %v546, 4
        %v548 = vadd.f32 %v546, %v547
        %v549 = vrot.slane %v548, 2
        %v550 = vadd.f32 %v548, %v549
        %v551 = vrot.slane %v550, 1
        %v552 = vadd.f32 %v550, %v551
        %v553 = vsel %vm496, %v488, 0.0
        %v554 = vrot.slane %v553, 4
        %v555 = vadd.f32 %v553, %v554
        %v556 = vrot.slane %v555, 2
        %v557 = vadd.f32 %v555, %v556
        %v558 = vrot.slane %v557, 1
        %v559 = vadd.f32 %v557, %v558
        %v560 = vsel %vm496, %v489, 0.0
        %v561 = vrot.slane %v560, 4
        %v562 = vadd.f32 %v560, %v561
        %v563 = vrot.slane %v562, 2
        %v564 = vadd.f32 %v562, %v563
        %v565 = vrot.slane %v564, 1
        %v566 = vadd.f32 %v564, %v565
        %v567 = vsel %vm496, %v490, 0.0
        %v568 = vrot.slane %v567, 4
        %v569 = vadd.f32 %v567, %v568
        %v570 = vrot.slane %v569, 2
        %v571 = vadd.f32 %v569, %v570
        %v572 = vrot.slane %v571, 1
        %v573 = vadd.f32 %v571, %v572
        %v574 = vsel %vm496, %v491, 0.0
        %v575 = vrot.slane %v574, 4
        %v576 = vadd.f32 %v574, %v575
        %v577 = vrot.slane %v576, 2
        %v578 = vadd.f32 %v576, %v577
        %v579 = vrot.slane %v578, 1
        %v580 = vadd.f32 %v578, %v579
        %v581 = vsel %vm496, %v492, 0.0
        %v582 = vrot.slane %v581, 4
        %v583 = vadd.f32 %v581, %v582
        %v584 = vrot.slane %v583, 2
        %v585 = vadd.f32 %v583, %v584
        %v586 = vrot.slane %v585, 1
        %v587 = vadd.f32 %v585, %v586
        %v588 = vsel %vm496, %v493, 0.0
        %v589 = vrot.slane %v588, 4
        %v590 = vadd.f32 %v588, %v589
        %v591 = vrot.slane %v590, 2
        %v592 = vadd.f32 %v590, %v591
        %v593 = vrot.slane %v592, 1
        %v594 = vadd.f32 %v592, %v593
        %v595 = vsel %vm496, %v494, 0.0
        %v596 = vrot.slane %v595, 4
        %v597 = vadd.f32 %v595, %v596
        %v598 = vrot.slane %v597, 2
        %v599 = vadd.f32 %v597, %v598
        %v600 = vrot.slane %v599, 1
        %v601 = vadd.f32 %v599, %v600
        %v602 = vsel %vm496, %v495, 0.0
        %v603 = vrot.slane %v602, 4
        %v604 = vadd.f32 %v602, %v603
        %v605 = vrot.slane %v604, 2
        %v606 = vadd.f32 %v604, %v605
        %v607 = vrot.slane %v606, 1
        %v608 = vadd.f32 %v606, %v607
        %v609 = vpack.c.bf16 %v503, %v503
        %v610 = vpack.c.bf16 %v510, %v510
        %v611 = vpack.c.bf16 %v517, %v517
        %v612 = vpack.c.bf16 %v524, %v524
        %v613 = vpack.c.bf16 %v531, %v531
        %v614 = vpack.c.bf16 %v538, %v538
        %v615 = vpack.c.bf16 %v545, %v545
        %v616 = vpack.c.bf16 %v552, %v552
        %v617 = vpack.c.bf16 %v559, %v559
        %v618 = vpack.c.bf16 %v566, %v566
        %v619 = vpack.c.bf16 %v573, %v573
        %v620 = vpack.c.bf16 %v580, %v580
        %v621 = vpack.c.bf16 %v587, %v587
        %v622 = vpack.c.bf16 %v594, %v594
        %v623 = vpack.c.bf16 %v601, %v601
        %v624 = vpack.c.bf16 %v608, %v608
        %v625 = vld [vmem:[%s2] sm:$0xf]
        %v626 = vld [vmem:[%s2 + $0x4] sm:$0xf]
        %v627 = vld [vmem:[%s2 + $0x8] sm:$0xf]
        %v628 = vld [vmem:[%s2 + $0xc] sm:$0xf]
        %v629 = vld [vmem:[%s3] sm:$0x1]
        %v631 = vlaneseq
        %v632 = vshrl.u32 %v631, 7
        %v633 = vsub.s32 0, %v632
        %v634 = vrot.slane %v629, %v633
        %v652 = vunpack.c.l.b16 %v609
        %v653 = vunpack.c.l.b16 %v610
        %v654 = vunpack.c.l.b16 %v611
        %v655 = vunpack.c.l.b16 %v612
        %v656 = vunpack.c.l.b16 %v613
        %v657 = vunpack.c.l.b16 %v614
        %v658 = vunpack.c.l.b16 %v615
        %v659 = vunpack.c.l.b16 %v616
        %v660 = vunpack.c.l.b16 %v617
        %v661 = vunpack.c.l.b16 %v618
        %v662 = vunpack.c.l.b16 %v619
        %v663 = vunpack.c.l.b16 %v620
        %v664 = vunpack.c.l.b16 %v621
        %v665 = vunpack.c.l.b16 %v622
        %v666 = vunpack.c.l.b16 %v623
        %v667 = vunpack.c.l.b16 %v624
        %vm668 = vcmask 1041409
        %v669 = vsel %vm668, %v653, %v652
        %vm670 = vcmask 1042434
        %v671 = vsel %vm670, %v654, %v669
        %vm672 = vcmask 1043459
        %v673 = vsel %vm672, %v655, %v671
        %vm674 = vcmask 1044484
        %v675 = vsel %vm674, %v656, %v673
        %vm676 = vcmask 1045509
        %v677 = vsel %vm676, %v657, %v675
        %vm678 = vcmask 1046534
        %v679 = vsel %vm678, %v658, %v677
        %vm680 = vcmask 1047559
        %v681 = vsel %vm680, %v659, %v679
        %v682 = vsel %vm668, %v661, %v660
        %v683 = vsel %vm670, %v662, %v682
        %v684 = vsel %vm672, %v663, %v683
        %v685 = vsel %vm674, %v664, %v684
        %v686 = vsel %vm676, %v665, %v685
        %v687 = vsel %vm678, %v666, %v686
        %v688 = vsel %vm680, %v667, %v687
        %v689 = vpack.c.b16 %v688, %v681
        %v694 = vunpack.c.l.b16 %v625
        %v695 = vunpack.c.l.b16 %v626
        %v696 = vunpack.c.l.b16 %v627
        %v697 = vunpack.c.l.b16 %v628
        %v698 = vpack.c.b16 %v695, %v694
        %v699 = vpack.c.b16 %v697, %v696
        %v703 = vsel %vm496, %v689, 0
        %705 = vmatprep.subr.bf16.mxu0 0
        %706 = vmatpush1.bf16.msra.mxu0 0
        %707 = vmatprep.subr.bf16.mxu0 0
        %708 = vmatpush1.bf16.msra.mxu0 0
        %709 = vmatprep.subr.bf16.mxu0 0
        %710 = vmatpush1.bf16.msra.mxu0 0
        %711 = vmatprep.subr.bf16.mxu0 0
        %712 = vmatpush1.bf16.msra.mxu0 0
        %713 = vmatprep.subr.bf16.mxu0 0
        %714 = vmatpush1.bf16.msra.mxu0 0
        %715 = vmatprep.subr.bf16.mxu0 0
        %716 = vmatpush1.bf16.msra.mxu0 0
        %717 = vmatprep.subr.bf16.mxu0 0
        %718 = vmatpush1.bf16.msra.mxu0 %v699
        %719 = vmatprep.subr.bf16.mxu0 0
        %720 = vmatpush1.bf16.msra.mxu0 %v698
        %721 = vmatprep.subr.bf16.mxu0 0
        %722 = vmatpush2.bf16.msra.mxu0 0
        %723 = vmatprep.subr.bf16.mxu0 0
        %724 = vmatpush2.bf16.msra.mxu0 0
        %725 = vmatprep.subr.bf16.mxu0 0
        %726 = vmatpush2.bf16.msra.mxu0 0
        %727 = vmatprep.subr.bf16.mxu0 0
        %728 = vmatpush2.bf16.msra.mxu0 0
        %729 = vmatprep.subr.bf16.mxu0 0
        %730 = vmatpush2.bf16.msra.mxu0 0
        %731 = vmatprep.subr.bf16.mxu0 0
        %732 = vmatpush2.bf16.msra.mxu0 0
        %733 = vmatprep.subr.bf16.mxu0 0
        %734 = vmatpush2.bf16.msra.mxu0 0
        %735 = vmatprep.subr.bf16.mxu0 0
        %736 = vmatpush2.bf16.msra.mxu0 0
        %737 = vmatprep.mubr.bf16.mxu0 0
        %738 = vmatmul.mubr.bf16.gmra.mxu0 %v703
        %v739 = vpop.f32.mrf.mxu0
        %v740 = vadd.f32 %v634, %v739
        %v741 = vpop.f32.mrf.mxu0
        %v742 = vpop.f32.mrf.mxu0
        %v743 = vadd.f32 %v634, %v742
        %v744 = vpop.f32.mrf.mxu0
        %745 = vdwg.mxu0
        %v746 = vmul.f32 %v740, %v362
        %v747 = vmul.f32 %v743, %v363
        %v748 = vmax.f32 %v746, 0.0
        %v749 = vmax.f32 %v747, 0.0
        %v750 = vpack.c.bf16 %v749, %v748
        %v752 = vunpack.c.l.b16 %v750
        %v753 = vunpack.c.h.b16 %v750
        %v754 = vpack.c.b16 %v752, %v752
        %v755 = vpack.c.b16 %v753, %v753
        %v758 = vunpack.c.l.bf16 %v754
        %v759 = vunpack.c.l.bf16 %v755
        %v760 = vmul.f32 %v370, %v758
        %v761 = vmul.f32 %v377, %v758
        %v762 = vmul.f32 %v384, %v758
        %v763 = vmul.f32 %v391, %v758
        %v764 = vmul.f32 %v398, %v758
        %v765 = vmul.f32 %v405, %v758
        %v766 = vmul.f32 %v412, %v758
        %v767 = vmul.f32 %v419, %v758
        %v768 = vmul.f32 %v426, %v759
        %v769 = vmul.f32 %v433, %v759
        %v770 = vmul.f32 %v440, %v759
        %v771 = vmul.f32 %v447, %v759
        %v772 = vmul.f32 %v454, %v759
        %v773 = vmul.f32 %v461, %v759
        %v774 = vmul.f32 %v468, %v759
        %v775 = vmul.f32 %v475, %v759
        %vm776 = vcmask 130048
        %v777 = vsel %vm776, %v760, 0.0
        %v778 = vrot.slane %v777, 4
        %v779 = vadd.f32 %v777, %v778
        %v780 = vrot.slane %v779, 2
        %v781 = vadd.f32 %v779, %v780
        %v782 = vrot.slane %v781, 1
        %v783 = vadd.f32 %v781, %v782
        %v784 = vsel %vm776, %v761, 0.0
        %v785 = vrot.slane %v784, 4
        %v786 = vadd.f32 %v784, %v785
        %v787 = vrot.slane %v786, 2
        %v788 = vadd.f32 %v786, %v787
        %v789 = vrot.slane %v788, 1
        %v790 = vadd.f32 %v788, %v789
        %v791 = vsel %vm776, %v762, 0.0
        %v792 = vrot.slane %v791, 4
        %v793 = vadd.f32 %v791, %v792
        %v794 = vrot.slane %v793, 2
        %v795 = vadd.f32 %v793, %v794
        %v796 = vrot.slane %v795, 1
        %v797 = vadd.f32 %v795, %v796
        %v798 = vsel %vm776, %v763, 0.0
        %v799 = vrot.slane %v798, 4
        %v800 = vadd.f32 %v798, %v799
        %v801 = vrot.slane %v800, 2
        %v802 = vadd.f32 %v800, %v801
        %v803 = vrot.slane %v802, 1
        %v804 = vadd.f32 %v802, %v803
        %v805 = vsel %vm776, %v764, 0.0
        %v806 = vrot.slane %v805, 4
        %v807 = vadd.f32 %v805, %v806
        %v808 = vrot.slane %v807, 2
        %v809 = vadd.f32 %v807, %v808
        %v810 = vrot.slane %v809, 1
        %v811 = vadd.f32 %v809, %v810
        %v812 = vsel %vm776, %v765, 0.0
        %v813 = vrot.slane %v812, 4
        %v814 = vadd.f32 %v812, %v813
        %v815 = vrot.slane %v814, 2
        %v816 = vadd.f32 %v814, %v815
        %v817 = vrot.slane %v816, 1
        %v818 = vadd.f32 %v816, %v817
        %v819 = vsel %vm776, %v766, 0.0
        %v820 = vrot.slane %v819, 4
        %v821 = vadd.f32 %v819, %v820
        %v822 = vrot.slane %v821, 2
        %v823 = vadd.f32 %v821, %v822
        %v824 = vrot.slane %v823, 1
        %v825 = vadd.f32 %v823, %v824
        %v826 = vsel %vm776, %v767, 0.0
        %v827 = vrot.slane %v826, 4
        %v828 = vadd.f32 %v826, %v827
        %v829 = vrot.slane %v828, 2
        %v830 = vadd.f32 %v828, %v829
        %v831 = vrot.slane %v830, 1
        %v832 = vadd.f32 %v830, %v831
        %v833 = vsel %vm776, %v768, 0.0
        %v834 = vrot.slane %v833, 4
        %v835 = vadd.f32 %v833, %v834
        %v836 = vrot.slane %v835, 2
        %v837 = vadd.f32 %v835, %v836
        %v838 = vrot.slane %v837, 1
        %v839 = vadd.f32 %v837, %v838
        %v840 = vsel %vm776, %v769, 0.0
        %v841 = vrot.slane %v840, 4
        %v842 = vadd.f32 %v840, %v841
        %v843 = vrot.slane %v842, 2
        %v844 = vadd.f32 %v842, %v843
        %v845 = vrot.slane %v844, 1
        %v846 = vadd.f32 %v844, %v845
        %v847 = vsel %vm776, %v770, 0.0
        %v848 = vrot.slane %v847, 4
        %v849 = vadd.f32 %v847, %v848
        %v850 = vrot.slane %v849, 2
        %v851 = vadd.f32 %v849, %v850
        %v852 = vrot.slane %v851, 1
        %v853 = vadd.f32 %v851, %v852
        %v854 = vsel %vm776, %v771, 0.0
        %v855 = vrot.slane %v854, 4
        %v856 = vadd.f32 %v854, %v855
        %v857 = vrot.slane %v856, 2
        %v858 = vadd.f32 %v856, %v857
        %v859 = vrot.slane %v858, 1
        %v860 = vadd.f32 %v858, %v859
        %v861 = vsel %vm776, %v772, 0.0
        %v862 = vrot.slane %v861, 4
        %v863 = vadd.f32 %v861, %v862
        %v864 = vrot.slane %v863, 2
        %v865 = vadd.f32 %v863, %v864
        %v866 = vrot.slane %v865, 1
        %v867 = vadd.f32 %v865, %v866
        %v868 = vsel %vm776, %v773, 0.0
        %v869 = vrot.slane %v868, 4
        %v870 = vadd.f32 %v868, %v869
        %v871 = vrot.slane %v870, 2
        %v872 = vadd.f32 %v870, %v871
        %v873 = vrot.slane %v872, 1
        %v874 = vadd.f32 %v872, %v873
        %v875 = vsel %vm776, %v774, 0.0
        %v876 = vrot.slane %v875, 4
        %v877 = vadd.f32 %v875, %v876
        %v878 = vrot.slane %v877, 2
        %v879 = vadd.f32 %v877, %v878
        %v880 = vrot.slane %v879, 1
        %v881 = vadd.f32 %v879, %v880
        %v882 = vsel %vm776, %v775, 0.0
        %v883 = vrot.slane %v882, 4
        %v884 = vadd.f32 %v882, %v883
        %v885 = vrot.slane %v884, 2
        %v886 = vadd.f32 %v884, %v885
        %v887 = vrot.slane %v886, 1
        %v888 = vadd.f32 %v886, %v887
        %v889 = vpack.c.bf16 %v783, %v783
        %v890 = vpack.c.bf16 %v790, %v790
        %v891 = vpack.c.bf16 %v797, %v797
        %v892 = vpack.c.bf16 %v804, %v804
        %v893 = vpack.c.bf16 %v811, %v811
        %v894 = vpack.c.bf16 %v818, %v818
        %v895 = vpack.c.bf16 %v825, %v825
        %v896 = vpack.c.bf16 %v832, %v832
        %v897 = vpack.c.bf16 %v839, %v839
        %v898 = vpack.c.bf16 %v846, %v846
        %v899 = vpack.c.bf16 %v853, %v853
        %v900 = vpack.c.bf16 %v860, %v860
        %v901 = vpack.c.bf16 %v867, %v867
        %v902 = vpack.c.bf16 %v874, %v874
        %v903 = vpack.c.bf16 %v881, %v881
        %v904 = vpack.c.bf16 %v888, %v888
        %v905 = vld [vmem:[%s4] sm:$0xf]
        %v906 = vld [vmem:[%s4 + $0x4] sm:$0xf]
        %v907 = vld [vmem:[%s4 + $0x8] sm:$0xf]
        %v908 = vld [vmem:[%s4 + $0xc] sm:$0xf]
        %v909 = vld [vmem:[%s4 + $0x10] sm:$0xf]
        %v910 = vld [vmem:[%s4 + $0x14] sm:$0xf]
        %v911 = vld [vmem:[#allocation2] sm:$0x1]
        %v928 = vunpack.c.l.b16 %v889
        %v929 = vunpack.c.l.b16 %v890
        %v930 = vunpack.c.l.b16 %v891
        %v931 = vunpack.c.l.b16 %v892
        %v932 = vunpack.c.l.b16 %v893
        %v933 = vunpack.c.l.b16 %v894
        %v934 = vunpack.c.l.b16 %v895
        %v935 = vunpack.c.l.b16 %v896
        %v936 = vunpack.c.l.b16 %v897
        %v937 = vunpack.c.l.b16 %v898
        %v938 = vunpack.c.l.b16 %v899
        %v939 = vunpack.c.l.b16 %v900
        %v940 = vunpack.c.l.b16 %v901
        %v941 = vunpack.c.l.b16 %v902
        %v942 = vunpack.c.l.b16 %v903
        %v943 = vunpack.c.l.b16 %v904
        %v944 = vsel %vm668, %v929, %v928
        %v945 = vsel %vm670, %v930, %v944
        %v946 = vsel %vm672, %v931, %v945
        %v947 = vsel %vm674, %v932, %v946
        %v948 = vsel %vm676, %v933, %v947
        %v949 = vsel %vm678, %v934, %v948
        %v950 = vsel %vm680, %v935, %v949
        %v951 = vsel %vm668, %v937, %v936
        %v952 = vsel %vm670, %v938, %v951
        %v953 = vsel %vm672, %v939, %v952
        %v954 = vsel %vm674, %v940, %v953
        %v955 = vsel %vm676, %v941, %v954
        %v956 = vsel %vm678, %v942, %v955
        %v957 = vsel %vm680, %v943, %v956
        %v958 = vpack.c.b16 %v957, %v950
        %v961 = vunpack.c.l.b16 %v909
        %v962 = vunpack.c.l.b16 %v910
        %v963 = vpack.c.b16 %v962, %v961
        %v966 = vsel %vm776, %v958, 0
        %968 = vmatprep.subr.bf16.mxu0 0
        %969 = vmatpush1.bf16.msra.mxu0 0
        %970 = vmatprep.subr.bf16.mxu0 0
        %971 = vmatpush1.bf16.msra.mxu0 0
        %972 = vmatprep.subr.bf16.mxu0 0
        %973 = vmatpush1.bf16.msra.mxu0 0
        %974 = vmatprep.subr.bf16.mxu0 0
        %975 = vmatpush1.bf16.msra.mxu0 0
        %976 = vmatprep.subr.bf16.mxu0 0
        %977 = vmatpush1.bf16.msra.mxu0 0
        %978 = vmatprep.subr.bf16.mxu0 0
        %979 = vmatpush1.bf16.msra.mxu0 0
        %980 = vmatprep.subr.bf16.mxu0 0
        %981 = vmatpush1.bf16.msra.mxu0 0
        %982 = vmatprep.subr.bf16.mxu0 0
        %983 = vmatpush1.bf16.msra.mxu0 %v963
        %984 = vmatprep.subr.bf16.mxu0 0
        %985 = vmatpush2.bf16.msra.mxu0 0
        %986 = vmatprep.subr.bf16.mxu0 0
        %987 = vmatpush2.bf16.msra.mxu0 0
        %988 = vmatprep.subr.bf16.mxu0 0
        %989 = vmatpush2.bf16.msra.mxu0 0
        %990 = vmatprep.subr.bf16.mxu0 0
        %991 = vmatpush2.bf16.msra.mxu0 0
        %992 = vmatprep.subr.bf16.mxu0 0
        %993 = vmatpush2.bf16.msra.mxu0 0
        %994 = vmatprep.subr.bf16.mxu0 0
        %995 = vmatpush2.bf16.msra.mxu0 0
        %996 = vmatprep.subr.bf16.mxu0 0
        %997 = vmatpush2.bf16.msra.mxu0 0
        %998 = vmatprep.subr.bf16.mxu0 0
        %999 = vmatpush2.bf16.msra.mxu0 0
        %1000 = vmatprep.mubr.bf16.mxu0 0
        %1001 = vmatmul.mubr.bf16.gmra.mxu0 %v966
        %v1002 = vpop.f32.mrf.mxu0
        %v1003 = vadd.f32 0.0, %v1002
        %v1004 = vpop.f32.mrf.mxu0
        %v1005 = vpop.f32.mrf.mxu0
        %v1006 = vadd.f32 0.0, %v1005
        %v1007 = vpop.f32.mrf.mxu0
        %1008 = vdwg.mxu0
        %v1013 = vunpack.c.l.b16 %v905
        %v1014 = vunpack.c.l.b16 %v906
        %v1015 = vunpack.c.l.b16 %v907
        %v1016 = vunpack.c.l.b16 %v908
        %v1017 = vpack.c.b16 %v1014, %v1013
        %v1018 = vpack.c.b16 %v1016, %v1015
        %1021 = vmatprep.subr.bf16.mxu0 0
        %1022 = vmatpush1.bf16.msra.mxu0 0
        %1023 = vmatprep.subr.bf16.mxu0 0
        %1024 = vmatpush1.bf16.msra.mxu0 0
        %1025 = vmatprep.subr.bf16.mxu0 0
        %1026 = vmatpush1.bf16.msra.mxu0 0
        %1027 = vmatprep.subr.bf16.mxu0 0
        %1028 = vmatpush1.bf16.msra.mxu0 0
        %1029 = vmatprep.subr.bf16.mxu0 0
        %1030 = vmatpush1.bf16.msra.mxu0 0
        %1031 = vmatprep.subr.bf16.mxu0 0
        %1032 = vmatpush1.bf16.msra.mxu0 0
        %1033 = vmatprep.subr.bf16.mxu0 0
        %1034 = vmatpush1.bf16.msra.mxu0 %v1018
        %1035 = vmatprep.subr.bf16.mxu0 0
        %1036 = vmatpush1.bf16.msra.mxu0 %v1017
        %1037 = vmatprep.subr.bf16.mxu0 0
        %1038 = vmatpush2.bf16.msra.mxu0 0
        %1039 = vmatprep.subr.bf16.mxu0 0
        %1040 = vmatpush2.bf16.msra.mxu0 0
        %1041 = vmatprep.subr.bf16.mxu0 0
        %1042 = vmatpush2.bf16.msra.mxu0 0
        %1043 = vmatprep.subr.bf16.mxu0 0
        %1044 = vmatpush2.bf16.msra.mxu0 0
        %1045 = vmatprep.subr.bf16.mxu0 0
        %1046 = vmatpush2.bf16.msra.mxu0 0
        %1047 = vmatprep.subr.bf16.mxu0 0
        %1048 = vmatpush2.bf16.msra.mxu0 0
        %1049 = vmatprep.subr.bf16.mxu0 0
        %1050 = vmatpush2.bf16.msra.mxu0 0
        %1051 = vmatprep.subr.bf16.mxu0 0
        %1052 = vmatpush2.bf16.msra.mxu0 0
        %1053 = vmatprep.mubr.bf16.mxu0 0
        %1054 = vmatmul.mubr.bf16.gmra.mxu0 %v703
        %v1055 = vpop.f32.mrf.mxu0
        %v1056 = vadd.f32 %v1003, %v1055
        %v1057 = vpop.f32.mrf.mxu0
        %v1058 = vpop.f32.mrf.mxu0
        %v1059 = vadd.f32 %v1006, %v1058
        %v1060 = vpop.f32.mrf.mxu0
        %1061 = vdwg.mxu0
        %v1063 = vlaneseq
        %v1064 = vshrl.u32 %v1063, 7
        %v1065 = vsub.s32 0, %v1064
        %v1066 = vrot.slane %v911, %v1065
        %v1068 = vadd.f32 %v1056, %v1066
        %v1069 = vadd.f32 %v1059, %v1066
        %v1070 = vmul.f32 %v1068, %v362
        %v1071 = vmul.f32 %v1069, %v363
        %v1072 = vmax.f32 %v1070, 0.0
        %v1073 = vmax.f32 %v1071, 0.0
        %1076 = vrot.lane.b32.xlu0 %v1072, 16
        %v1077 = vpop.permute.xlu0 %1076
        %1078 = vrot.lane.b32.xlu0 %v1073, 16
        %v1079 = vpop.permute.xlu0 %1078
        %v1082 = vsel %vm776, %v748, %v1077
        %v1083 = vsel %vm776, %v749, %v1079
        %v1084 = vadd.f32 %v1082, %v345
        %v1085 = vadd.f32 %v1083, %v346
        %v1086 = vld [vmem:[%s6] sm:$0xf]
        %v1087 = vld [vmem:[%s6 + $0x4] sm:$0xf]
        %v1088 = vld [vmem:[%s6 + $0x8] sm:$0xf]
        %v1089 = vld [vmem:[%s6 + $0xc] sm:$0xf]
        %v1090 = vld [vmem:[%s7] sm:$0x1]
        %v1091 = vpack.c.bf16 %v1085, %v1084
        %v1093 = vlaneseq
        %v1094 = vshrl.u32 %v1093, 7
        %v1095 = vsub.s32 0, %v1094
        %v1096 = vrot.slane %v1090, %v1095
        %v1102 = vunpack.c.l.b16 %v1086
        %v1103 = vunpack.c.l.b16 %v1087
        %v1104 = vunpack.c.l.b16 %v1088
        %v1105 = vunpack.c.l.b16 %v1089
        %v1106 = vpack.c.b16 %v1103, %v1102
        %v1107 = vpack.c.b16 %v1105, %v1104
        %v1111 = vsel %vm496, %v1091, 0
        %1113 = vmatprep.subr.bf16.mxu0 0
        %1114 = vmatpush1.bf16.msra.mxu0 0
        %1115 = vmatprep.subr.bf16.mxu0 0
        %1116 = vmatpush1.bf16.msra.mxu0 0
        %1117 = vmatprep.subr.bf16.mxu0 0
        %1118 = vmatpush1.bf16.msra.mxu0 0
        %1119 = vmatprep.subr.bf16.mxu0 0
        %1120 = vmatpush1.bf16.msra.mxu0 0
        %1121 = vmatprep.subr.bf16.mxu0 0
        %1122 = vmatpush1.bf16.msra.mxu0 0
        %1123 = vmatprep.subr.bf16.mxu0 0
        %1124 = vmatpush1.bf16.msra.mxu0 0
        %1125 = vmatprep.subr.bf16.mxu0 0
        %1126 = vmatpush1.bf16.msra.mxu0 %v1107
        %1127 = vmatprep.subr.bf16.mxu0 0
        %1128 = vmatpush1.bf16.msra.mxu0 %v1106
        %1129 = vmatprep.subr.bf16.mxu0 0
        %1130 = vmatpush2.bf16.msra.mxu0 0
        %1131 = vmatprep.subr.bf16.mxu0 0
        %1132 = vmatpush2.bf16.msra.mxu0 0
        %1133 = vmatprep.subr.bf16.mxu0 0
        %1134 = vmatpush2.bf16.msra.mxu0 0
        %1135 = vmatprep.subr.bf16.mxu0 0
        %1136 = vmatpush2.bf16.msra.mxu0 0
        %1137 = vmatprep.subr.bf16.mxu0 0
        %1138 = vmatpush2.bf16.msra.mxu0 0
        %1139 = vmatprep.subr.bf16.mxu0 0
        %1140 = vmatpush2.bf16.msra.mxu0 0
        %1141 = vmatprep.subr.bf16.mxu0 0
        %1142 = vmatpush2.bf16.msra.mxu0 0
        %1143 = vmatprep.subr.bf16.mxu0 0
        %1144 = vmatpush2.bf16.msra.mxu0 0
        %1145 = vmatprep.mubr.bf16.mxu0 0
        %1146 = vmatmul.mubr.bf16.gmra.mxu0 %v1111
        %v1147 = vpop.f32.mrf.mxu0
        %v1148 = vadd.f32 %v1096, %v1147
        %v1149 = vpop.f32.mrf.mxu0
        %v1150 = vpop.f32.mrf.mxu0
        %v1151 = vadd.f32 %v1096, %v1150
        %v1152 = vpop.f32.mrf.mxu0
        %1153 = vdwg.mxu0
        %1154 = vst.msk [vmem:[%s328] sm:$0xff] %vm496, %v1148
        %1155 = vst.msk [vmem:[%s328 + $0x8] sm:$0xff] %vm496, %v1151
        %s1156 = sand.u32 %s209, 1
        %s1157 = scalar_lea.sflag [#allocation4], %s1156
        %s1158 = sand.u32 %s209, 1
        %s1159 = smul.addr %s1158, 16
        %s1160 = scalar_lea.vmem [#allocation5], %s1159
        // Predicated region
        $region57: #{tpu_custom_call.1} parent=51 // pred_check
          %p1161 = pneg %p219
        $region58: #{tpu_custom_call.1} parent=51 // pred_check_branch
          %1163 = sbr.rel (%p1161) target = $region60
        $region59: #{tpu_custom_call.1} parent=51 // pred_region
          %s1164 = smul.u32 2, %s23
          %s1166 = ssub.s32 256, 256
          %1167 = vsyncadd %s1157, %s1166
          %s1168 = smul.addr %s1164, 128
          %s1169 = scalar_lea.hbm %s8, %s1168
          %s1170 = sshll.u32 %s1160, 4
          %s1171 = int_to_ptr.vmem [resolvable:$true] %s1170
          %1176 = dma.vmem_to_hbm [thread:$0]  %s1171, 256, %s1169, %s1157, 128, 128, 8
        $region60: #{tpu_custom_call.1} parent=51 // pred_fallthru
          _
      $region52: #{tpu_custom_call.1} parent=5 // pred_fallthru
        _
      %p1177 = scmp.le.s32.totalorder 2, %s18
      // Predicated region
      $region61: #{tpu_custom_call.1} parent=5 // pred_check
        %p1178 = pneg %p1177
      $region62: #{tpu_custom_call.1} parent=5 // pred_check_branch
        %1180 = sbr.rel (%p1178) target = $region64
      $region63: #{tpu_custom_call.1} parent=5 // pred_region
        %s1181 = ssub.s32 %s18, 2
        // Predicated region
        $region65: #{tpu_custom_call.1} parent=63 // pred_check
          %p1182 = pneg %p225
        $region66: #{tpu_custom_call.1} parent=63 // pred_check_branch
          %1184 = sbr.rel (%p1182) target = $region68
        $region67: #{tpu_custom_call.1} parent=63 // pred_region
          %s1185 = sand.u32 %s210, 1
          %s1186 = scalar_lea.sflag [#allocation4], %s1185
          %s1187 = sand.u32 %s210, 1
          %s1188 = smul.addr %s1187, 16
          %s1189 = scalar_lea.vmem [#allocation5], %s1188
          %1190 = dma.done %s1186, 256
        $region68: #{tpu_custom_call.1} parent=63 // pred_fallthru
          _
      $region64: #{tpu_custom_call.1} parent=5 // pred_fallthru
        _
    $region6: #{tpu_custom_call.1} parent=1 // loop_footer
      %s22 = sadd.s32 1, %s18
    $region7: #{tpu_custom_call.1} parent=1 // loop_footer_branch
      %17 = sbr.rel target = $region3
    $region8: #{tpu_custom_call.1} parent=1 // loop_exit
      _
    %1191 = vsyncpa [#allocation3], 1
    %s1192 = scalar_lea.sflag [#allocation3], 1
    %1193 = vsyncpa %s1192, 1
    %1194 = vsyncpa [#allocation4], 1
    %s1195 = scalar_lea.sflag [#allocation4], 1
    %1196 = vsyncpa %s1195, 1

</llo_original>
